<compile_context>
chip_gen: v5e
topology: v5e:2x2
jax: 0.10.0
libtpu: 0.0.40
codegen_flags: <defaults>
</compile_context>

<pallas_src>
import numpy as np
import jax
import jax.numpy as jnp
from jax.experimental import pallas as pl
from jax.experimental.pallas import tpu as pltpu


def _round_up(n, m):
    return ((n + m - 1) // m) * m


# ---------------------------------------------------------------------------
# Kernels
# ---------------------------------------------------------------------------
def srbf_kernel_resident(x_ref, wfe_ref, w1_ref, g_ref, gc_ref,
                         ypred_ref, feat1_ref, feat_ref):
    """w_fe resident in VMEM: full in_dim contraction per batch tile."""
    feats = jnp.dot(x_ref[...], wfe_ref[...], preferred_element_type=jnp.float32)
    feat_ref[...] = feats                                     # (TB, M_pad) f32

    f1 = jnp.dot(feats, w1_ref[...], preferred_element_type=jnp.float32)
    feat1_ref[...] = f1                                       # (TB, J_pad) f32

    # Merged quadratic expansion:  [f1^2, f1] @ [ga; gb] + gc
    q = jnp.concatenate([f1 * f1, f1], axis=-1)               # (TB, 2*J_pad)
    e = jnp.dot(q, g_ref[...], preferred_element_type=jnp.float32) + gc_ref[...]
    ypred_ref[...] = jnp.exp(e)                                # EUP slot


def srbf_kernel_streamed(x_ref, wfe_ref, w1_ref, g_ref, gc_ref,
                         ypred_ref, feat1_ref, feat_ref):
    """in_dim streamed over the trailing grid axis; accumulate into feat_ref
    (the features output block, resident across the reduction axis)."""
    k = pl.program_id(1)

    @pl.when(k == 0)
    def _init():
        feat_ref[...] = jnp.zeros_like(feat_ref)

    feat_ref[...] += jnp.dot(x_ref[...], wfe_ref[...],
                             preferred_element_type=jnp.float32)

    @pl.when(k == pl.num_programs(1) - 1)
    def _finalize():
        feats = feat_ref[...]
        f1 = jnp.dot(feats, w1_ref[...], preferred_element_type=jnp.float32)
        feat1_ref[...] = f1
        q = jnp.concatenate([f1 * f1, f1], axis=-1)
        e = jnp.dot(q, g_ref[...], preferred_element_type=jnp.float32) + gc_ref[...]
        ypred_ref[...] = jnp.exp(e)


# ---------------------------------------------------------------------------
# Host-side one-time weight preparation
# ---------------------------------------------------------------------------
def prepare_srbf_params(w_fe, w1_part1, w1_part2, m1, n1, sigma1,
                        matmul_dtype=jnp.bfloat16):
    """Padding + quadratic-expansion terms (weight-only preprocessing)."""
    in_dim, M = w_fe.shape
    Jc, K = w1_part2.shape
    assert w1_part1.shape == (M, Jc)

    M_pad = _round_up(M, 128)
    J_pad = _round_up(Jc, 128)
    K_pad = _round_up(K, 128)
    in_dim_pad = _round_up(in_dim, 128)        # lane multiple only (no TK round-up)

    w_fe = jnp.asarray(w_fe, jnp.float32)
    w1_part1 = jnp.asarray(w1_part1, jnp.float32)
    w1_part2 = jnp.asarray(w1_part2, jnp.float32)
    emb = jnp.asarray(m1, jnp.float32) / jnp.asarray(n1, jnp.float32)[None, :]
    # -1 / (2 * sigma^2 * J) per class, folded into the expansion terms.
    scale = (-1.0 / (2.0 * jnp.asarray(sigma1, jnp.float32) ** 2 * Jc))[None, :]

    ga = (w1_part2 * w1_part2) * scale                          # (J, K)
    gb = (-2.0 * w1_part2 * emb) * scale                        # (J, K)
    gc = jnp.sum(emb * emb, axis=0, keepdims=True) * scale      # (1, K)

    def pad2(a, r, c):
        return jnp.pad(a, ((0, r - a.shape[0]), (0, c - a.shape[1])))

    # Merge ga/gb into one (2*J_pad)-deep contraction for the epilogue matmul.
    g = jnp.concatenate([pad2(ga, J_pad, K_pad), pad2(gb, J_pad, K_pad)], axis=0)

    params = dict(
        w_fe=pad2(w_fe, in_dim_pad, M_pad).astype(matmul_dtype),
        w1=pad2(w1_part1, M_pad, J_pad),
        g=g,
        gc=pad2(gc, 1, K_pad),
    )
    cfg = dict(in_dim=in_dim, in_dim_pad=in_dim_pad,
               M=M, J=Jc, K=K, M_pad=M_pad, J_pad=J_pad, K_pad=K_pad,
               matmul_dtype=matmul_dtype)
    return params, cfg


def _vmem_budget_bytes():
    """Generation-aware scoped-VMEM budget (headroom kept below physical VMEM)."""
    try:
        cap = int(pltpu.get_tpu_info().vmem_capacity_bytes)
    except Exception:
        cap = 64 * 1024 * 1024                        # conservative fallback
    if cap <= 64 * 1024 * 1024:                       # 64-MiB-VMEM parts (v7x-class)
        return max(cap - 12 * 1024 * 1024, 32 * 1024 * 1024)
    return min(cap - 28 * 1024 * 1024, 100 * 1024 * 1024)   # v5e / v6e (128 MiB)


# ---------------------------------------------------------------------------
# Forward wrapper
# ---------------------------------------------------------------------------
def srbf_forward(params, cfg, x, *, force_streamed=False, tk_override=None):
    """Returns (y_pred, y_pred, features1, features) like SRBF.forward (post_subclass=False)."""
    B = x.shape[0]
    x_flat = x.reshape(B, -1)
    assert x_flat.shape[1] == cfg["in_dim"]

    in_dim_pad = cfg["in_dim_pad"]
    M_pad, J_pad, K_pad = cfg["M_pad"], cfg["J_pad"], cfg["K_pad"]
    dt = jnp.dtype(cfg["matmul_dtype"])
    itemsize = dt.itemsize

    budget = _vmem_budget_bytes()
    small_vmem = budget <= 56 * 1024 * 1024           # 2-TensorCore / 64-MiB parts

    # Single-buffered resident weights (w1, G, gc) footprint.
    w_small_bytes = (M_pad * J_pad + 2 * J_pad * K_pad + 8 * K_pad) * 4
    w_fe_bytes = in_dim_pad * M_pad * itemsize

    def out_bytes(tb):                                 # double-buffered outputs
        return 2 * tb * (K_pad + J_pad + M_pad) * 4

    b_hint = max(8, _round_up(B, 8))

    def fits_resident(tb):
        return (2 * tb * in_dim_pad * itemsize + w_fe_bytes + w_small_bytes
                + out_bytes(tb) + (2 << 20)) <= budget

    use_resident = (not force_streamed) and fits_resident(8)

    if use_resident:
        TB = 8
        for tb in (1024, 512, 256, 128, 64, 32, 16, 8):
            if tb <= b_hint and fits_resident(tb):
                TB = tb
                break
        if small_vmem and TB > 8 and _round_up(B, TB) // TB < 2:
            TB = max(8, TB // 2)                       # keep >=2 batch tiles for 2 TCs
        B_pad = _round_up(B, TB)
        grid = (B_pad // TB,)
        TK = in_dim_pad
    else:
        TK = 128
        for t in range(2048, 0, -128):                 # largest lane-multiple divisor
            if in_dim_pad % t == 0:
                TK = t
                break
        if tk_override is not None:
            assert in_dim_pad % tk_override == 0
            TK = tk_override

        def fits_streamed(tb):
            return (2 * tb * TK * itemsize + 2 * TK * M_pad * itemsize
                    + w_small_bytes + out_bytes(tb) + (2 << 20)) <= budget

        TB = 8
        for tb in (1024, 512, 256, 128, 64, 32, 16, 8):
            if tb <= b_hint and fits_streamed(tb):
                TB = tb
                break
        if small_vmem and TB > 8 and _round_up(B, TB) // TB < 2:
            TB = max(8, TB // 2)
        B_pad = _round_up(B, TB)
        grid = (B_pad // TB, in_dim_pad // TK)

    # Pad in the source dtype, single cast to the matmul dtype.
    x_p = jnp.pad(x_flat, ((0, B_pad - B),
                           (0, in_dim_pad - x_flat.shape[1]))).astype(dt)

    flops = int(2 * B_pad * in_dim_pad * M_pad
                + 2 * B_pad * M_pad * J_pad
                + 2 * B_pad * (2 * J_pad) * K_pad)
    bytes_accessed = int(
        B_pad * in_dim_pad * itemsize
        + params["w_fe"].size * itemsize
        + (params["w1"].size + params["g"].size + params["gc"].size) * 4
        + B_pad * (K_pad + J_pad + M_pad) * 4)

    if use_resident:
        grid_spec = pltpu.PrefetchScalarGridSpec(
            num_scalar_prefetch=0,
            grid=grid,
            in_specs=[
                pl.BlockSpec((TB, in_dim_pad), lambda i: (i, 0)),        # x (streamed)
                pl.BlockSpec((in_dim_pad, M_pad), lambda i: (0, 0),
                             pipeline_mode=pl.Buffered(1)),              # w_fe resident
                pl.BlockSpec((M_pad, J_pad), lambda i: (0, 0),
                             pipeline_mode=pl.Buffered(1)),              # W1_part1
                pl.BlockSpec((2 * J_pad, K_pad), lambda i: (0, 0),
                             pipeline_mode=pl.Buffered(1)),              # G = [ga; gb]
                pl.BlockSpec((1, K_pad), lambda i: (0, 0),
                             pipeline_mode=pl.Buffered(1)),              # gc
            ],
            out_specs=(
                pl.BlockSpec((TB, K_pad), lambda i: (i, 0)),             # y_pred
                pl.BlockSpec((TB, J_pad), lambda i: (i, 0)),             # features1
                pl.BlockSpec((TB, M_pad), lambda i: (i, 0)),             # features
            ),
        )
        kernel = srbf_kernel_resident
        dim_sem = ("parallel",)
    else:
        grid_spec = pltpu.PrefetchScalarGridSpec(
            num_scalar_prefetch=0,
            grid=grid,
            in_specs=[
                pl.BlockSpec((TB, TK), lambda i, k: (i, k)),             # x
                pl.BlockSpec((TK, M_pad), lambda i, k: (k, 0)),          # w_fe streamed
                pl.BlockSpec((M_pad, J_pad), lambda i, k: (0, 0),
                             pipeline_mode=pl.Buffered(1)),              # W1_part1
                pl.BlockSpec((2 * J_pad, K_pad), lambda i, k: (0, 0),
                             pipeline_mode=pl.Buffered(1)),              # G = [ga; gb]
                pl.BlockSpec((1, K_pad), lambda i, k: (0, 0),
                             pipeline_mode=pl.Buffered(1)),              # gc
            ],
            out_specs=(
                pl.BlockSpec((TB, K_pad), lambda i, k: (i, 0)),
                pl.BlockSpec((TB, J_pad), lambda i, k: (i, 0)),
                pl.BlockSpec((TB, M_pad), lambda i, k: (i, 0)),          # accumulator
            ),
        )
        kernel = srbf_kernel_streamed
        dim_sem = ("parallel", "arbitrary")

    y_pred_p, feats1_p, feats_p = pl.pallas_call(
        kernel,
        grid_spec=grid_spec,
        out_shape=(
            jax.ShapeDtypeStruct((B_pad, K_pad), jnp.float32),
            jax.ShapeDtypeStruct((B_pad, J_pad), jnp.float32),
            jax.ShapeDtypeStruct((B_pad, M_pad), jnp.float32),
        ),
        compiler_params=pltpu.CompilerParams(
            dimension_semantics=dim_sem,
            vmem_limit_bytes=int(budget),
        ),
        cost_estimate=pl.CostEstimate(
            flops=flops,
            transcendentals=int(B_pad * K_pad),
            bytes_accessed=bytes_accessed,
        ),
    )(x_p, params["w_fe"], params["w1"], params["g"], params["gc"])

    y_pred = y_pred_p[:B, :cfg["K"]]
    feats1 = feats1_p[:B, :cfg["J"]]
    feats = feats_p[:B, :cfg["M"]]
    return y_pred, y_pred, feats1, feats


# ---------------------------------------------------------------------------
# Parameter init mirroring the PyTorch module
# ---------------------------------------------------------------------------
def init_params(key, in_dim, model_output_size, centroid_size, classes, length_scale):
    k1, k2, k3, k4 = jax.random.split(key, 4)
    # simple linear feature extractor weight (deterministic)
    w_fe = jax.random.normal(k1, (in_dim, model_output_size), jnp.float32) / np.sqrt(in_dim)
    # kaiming_normal_(nonlinearity='relu'), fan_in = tensor.size(1)
    w1_part1 = (jax.random.normal(k2, (model_output_size, centroid_size), jnp.float32)
                * np.sqrt(2.0 / centroid_size))
    w1_part2 = (jax.random.normal(k3, (centroid_size, classes), jnp.float32)
                * np.sqrt(2.0 / classes))
    n1 = jnp.zeros((classes,), jnp.float32) + 13.0
    m1 = jax.random.normal(k4, (centroid_size, classes), jnp.float32) * 0.05
    m1 = m1 * n1                    # __init__: self.m1 = self.m1 * self.N1
    sigma1 = jnp.full((classes,), length_scale, jnp.float32)
    return w_fe, w1_part1, w1_part2, m1, n1, sigma1


if __name__ == "__main__":
    key = jax.random.PRNGKey(0)
    kx, kp = jax.random.split(key)

    B, C, H, W = 2, 4, 16, 16            # in_dim = 1024
    classes = 8                          # num_centroids
    centroid_size = 16
    model_output_size = 32
    length_scale = 0.5

    x = jax.random.normal(kx, (B, C, H, W), jnp.float32)
    w_fe, w1_part1, w1_part2, m1, n1, sigma1 = init_params(
        kp, C * H * W, model_output_size, centroid_size, classes, length_scale)

    # pure-JAX reference of the same forward (high-precision dots)
    hp = jax.lax.Precision.HIGHEST
    xf = x.reshape(B, -1)
    f_ref = jnp.dot(xf, w_fe, precision=hp)
    f1_ref = jnp.dot(f_ref, w1_part1, precision=hp)
    z = jnp.einsum('ij,jk->ijk', f1_ref, w1_part2)
    emb = m1 / n1[None, :]
    diff = z - emb[None]
    yp_ref = jnp.exp(-((diff ** 2).mean(1)) / (2.0 * sigma1 ** 2))

    # f32 path, w_fe VMEM-resident (batch-only grid)
    p32, c32 = prepare_srbf_params(w_fe, w1_part1, w1_part2, m1, n1, sigma1,
                                   matmul_dtype=jnp.float32)
    y_pred, y_pred2, feats1, feats = srbf_forward(p32, c32, x)
    jax.block_until_ready((y_pred, feats1, feats))
    assert y_pred.shape == (B, classes)
    assert feats1.shape == (B, centroid_size)
    assert feats.shape == (B, model_output_size)
    assert jnp.allclose(feats, f_ref, rtol=1e-2, atol=2e-3)
    assert jnp.allclose(feats1, f1_ref, rtol=1e-2, atol=2e-3)
    assert jnp.allclose(y_pred, yp_ref, rtol=1e-2, atol=2e-3)

    # f32 path, streamed in_dim contraction (accumulates into the features output)
    y_s, _, f1_s, f_s = srbf_forward(p32, c32, x, force_streamed=True, tk_override=512)
    jax.block_until_ready((y_s, f1_s, f_s))
    assert jnp.allclose(f_s, f_ref, rtol=1e-2, atol=2e-3)
    assert jnp.allclose(f1_s, f1_ref, rtol=1e-2, atol=2e-3)
    assert jnp.allclose(y_s, yp_ref, rtol=1e-2, atol=2e-3)

    # bf16 fast path (bf16 feature-extractor matmul inputs, f32 accumulation)
    pbf, cbf = prepare_srbf_params(w_fe, w1_part1, w1_part2, m1, n1, sigma1,
                                   matmul_dtype=jnp.bfloat16)
    y_b, _, f1_b, f_b = srbf_forward(pbf, cbf, x)
    jax.block_until_ready((y_b, f1_b, f_b))
    assert jnp.allclose(f_b, f_ref, rtol=5e-2, atol=5e-2)
    assert jnp.allclose(f1_b, f1_ref, rtol=5e-2, atol=5e-2)
    assert jnp.allclose(y_b, yp_ref, rtol=5e-2, atol=5e-2)

    print("KERNEL_OK")
</pallas_src>

<mosaic_0001>
module attributes {stable_mosaic.version = 11 : i64} {
  func.func @srbf_kernel_resident(%arg0: i32, %arg1: memref<8x1024xf32, #tpu.memory_space<vmem>>, %arg2: memref<1024x128xf32, #tpu.memory_space<vmem>>, %arg3: memref<128x128xf32, #tpu.memory_space<vmem>>, %arg4: memref<256x128xf32, #tpu.memory_space<vmem>>, %arg5: memref<1x128xf32, #tpu.memory_space<vmem>>, %arg6: memref<8x128xf32, #tpu.memory_space<vmem>>, %arg7: memref<8x128xf32, #tpu.memory_space<vmem>>, %arg8: memref<8x128xf32, #tpu.memory_space<vmem>>) attributes {dimension_semantics = [#tpu.dimension_semantics<parallel>], iteration_bounds = array<i64: 1>, scalar_prefetch = 0 : i64, scratch_operands = 0 : i64, tpu.core_type = #tpu.core_type<tc>, window_params = [{transform_indices = @transform_0, window_bounds = array<i64: 8, 1024>}, {pipeline_mode = #tpu.pipeline_mode<synchronous>, transform_indices = @transform_1, window_bounds = array<i64: 1024, 128>}, {pipeline_mode = #tpu.pipeline_mode<synchronous>, transform_indices = @transform_2, window_bounds = array<i64: 128, 128>}, {pipeline_mode = #tpu.pipeline_mode<synchronous>, transform_indices = @transform_3, window_bounds = array<i64: 256, 128>}, {pipeline_mode = #tpu.pipeline_mode<synchronous>, transform_indices = @transform_4, window_bounds = array<i64: 1, 128>}, {transform_indices = @transform_5, window_bounds = array<i64: 8, 128>}, {transform_indices = @transform_6, window_bounds = array<i64: 8, 128>}, {transform_indices = @transform_7, window_bounds = array<i64: 8, 128>}]} {
    %c0 = arith.constant 0 : index
    %c0_0 = arith.constant 0 : index
    %0 = vector.load %arg1[%c0, %c0_0] : memref<8x1024xf32, #tpu.memory_space<vmem>>, vector<8x1024xf32>
    %c0_1 = arith.constant 0 : index
    %c0_2 = arith.constant 0 : index
    %1 = vector.load %arg2[%c0_1, %c0_2] : memref<1024x128xf32, #tpu.memory_space<vmem>>, vector<1024x128xf32>
    %cst = arith.constant dense<0.000000e+00> : vector<8x128xf32>
    %2 = tpu.matmul %0, %1, %cst {dimension_numbers = #tpu.dot_dimension_numbers<[1], [0], [0], [1], [0, 0, 1, 1], [], []>} : vector<8x1024xf32>, vector<1024x128xf32>, vector<8x128xf32> -> vector<8x128xf32>
    %c0_3 = arith.constant 0 : index
    %c0_4 = arith.constant 0 : index
    %3 = vector.load %arg8[%c0_3, %c0_4] : memref<8x128xf32, #tpu.memory_space<vmem>>, vector<8x128xf32>
    tpu.vector_store %arg8[%c0_3, %c0_4], %2 {strides = array<i32>} : memref<8x128xf32, #tpu.memory_space<vmem>>, vector<8x128xf32>,
    %c0_5 = arith.constant 0 : index
    %c0_6 = arith.constant 0 : index
    %4 = vector.load %arg3[%c0_5, %c0_6] : memref<128x128xf32, #tpu.memory_space<vmem>>, vector<128x128xf32>
    %cst_7 = arith.constant dense<0.000000e+00> : vector<8x128xf32>
    %5 = tpu.matmul %2, %4, %cst_7 {dimension_numbers = #tpu.dot_dimension_numbers<[1], [0], [0], [1], [0, 0, 1, 1], [], []>} : vector<8x128xf32>, vector<128x128xf32>, vector<8x128xf32> -> vector<8x128xf32>
    %c0_8 = arith.constant 0 : index
    %c0_9 = arith.constant 0 : index
    %6 = vector.load %arg7[%c0_8, %c0_9] : memref<8x128xf32, #tpu.memory_space<vmem>>, vector<8x128xf32>
    tpu.vector_store %arg7[%c0_8, %c0_9], %5 {strides = array<i32>} : memref<8x128xf32, #tpu.memory_space<vmem>>, vector<8x128xf32>,
    %7 = arith.mulf %5, %5 : vector<8x128xf32>
    %8 = tpu.concatenate %7, %5 in 1 : vector<8x128xf32>, vector<8x128xf32> -> vector<8x256xf32>
    %c0_10 = arith.constant 0 : index
    %c0_11 = arith.constant 0 : index
    %9 = vector.load %arg4[%c0_10, %c0_11] : memref<256x128xf32, #tpu.memory_space<vmem>>, vector<256x128xf32>
    %cst_12 = arith.constant dense<0.000000e+00> : vector<8x128xf32>
    %10 = tpu.matmul %8, %9, %cst_12 {dimension_numbers = #tpu.dot_dimension_numbers<[1], [0], [0], [1], [0, 0, 1, 1], [], []>} : vector<8x256xf32>, vector<256x128xf32>, vector<8x128xf32> -> vector<8x128xf32>
    %c0_13 = arith.constant 0 : index
    %c0_14 = arith.constant 0 : index
    %11 = vector.load %arg5[%c0_13, %c0_14] : memref<1x128xf32, #tpu.memory_space<vmem>>, vector<1x128xf32>
    %12 = vector.broadcast %11 : vector<1x128xf32> to vector<8x128xf32>
    %13 = arith.addf %10, %12 : vector<8x128xf32>
    %14 = math.exp %13 : vector<8x128xf32>
    %c0_15 = arith.constant 0 : index
    %c0_16 = arith.constant 0 : index
    %15 = vector.load %arg6[%c0_15, %c0_16] : memref<8x128xf32, #tpu.memory_space<vmem>>, vector<8x128xf32>
    tpu.vector_store %arg6[%c0_15, %c0_16], %14 {strides = array<i32>} : memref<8x128xf32, #tpu.memory_space<vmem>>, vector<8x128xf32>,
    return
  }
  func.func @transform_0(%arg0: i32) -> (i32, i32) {
    %c0_i32 = arith.constant 0 : i32
    %c0_i32_0 = arith.constant 0 : i32
    return %arg0, %c0_i32 : i32, i32
  }
  func.func @transform_1(%arg0: i32) -> (i32, i32) {
    %c0_i32 = arith.constant 0 : i32
    %c0_i32_0 = arith.constant 0 : i32
    %c0_i32_1 = arith.constant 0 : i32
    return %c0_i32, %c0_i32_0 : i32, i32
  }
  func.func @transform_2(%arg0: i32) -> (i32, i32) {
    %c0_i32 = arith.constant 0 : i32
    %c0_i32_0 = arith.constant 0 : i32
    %c0_i32_1 = arith.constant 0 : i32
    return %c0_i32, %c0_i32_0 : i32, i32
  }
  func.func @transform_3(%arg0: i32) -> (i32, i32) {
    %c0_i32 = arith.constant 0 : i32
    %c0_i32_0 = arith.constant 0 : i32
    %c0_i32_1 = arith.constant 0 : i32
    return %c0_i32, %c0_i32_0 : i32, i32
  }
  func.func @transform_4(%arg0: i32) -> (i32, i32) {
    %c0_i32 = arith.constant 0 : i32
    %c0_i32_0 = arith.constant 0 : i32
    %c0_i32_1 = arith.constant 0 : i32
    return %c0_i32, %c0_i32_0 : i32, i32
  }
  func.func @transform_5(%arg0: i32) -> (i32, i32) {
    %c0_i32 = arith.constant 0 : i32
    %c0_i32_0 = arith.constant 0 : i32
    return %arg0, %c0_i32 : i32, i32
  }
  func.func @transform_6(%arg0: i32) -> (i32, i32) {
    %c0_i32 = arith.constant 0 : i32
    %c0_i32_0 = arith.constant 0 : i32
    return %arg0, %c0_i32 : i32, i32
  }
  func.func @transform_7(%arg0: i32) -> (i32, i32) {
    %c0_i32 = arith.constant 0 : i32
    %c0_i32_0 = arith.constant 0 : i32
    return %arg0, %c0_i32 : i32, i32
  }
}

</mosaic_0001>

<llo_original>
// kernel: tpu_custom_call.1
$region0: #{tpu_custom_call.1}
  #allocation0 [shape = 'u32[]', space=smem, size = 0x4, offset = 0x4, fixed_abs, tag = 'smem constant byte address 0x4 - core index']
  #allocation1 [shape = 'u32[72,128]{1,0:T(1,128)}', space=vmem, size = 0x9000, scoped, tag = 'internal scratch']
  %s0 = inlined_call_operand.hbm [shape: f32[8,1024], index: 0, kind: input, shape index: {}]
  %s1 = inlined_call_operand.hbm [shape: f32[1024,128], index: 1, kind: input, shape index: {}]
  %s2 = inlined_call_operand.hbm [shape: f32[128,128], index: 2, kind: input, shape index: {}]
  %s3 = inlined_call_operand.hbm [shape: f32[256,128], index: 3, kind: input, shape index: {}]
  %s4 = inlined_call_operand.vmem [shape: f32[1,128], index: 4, kind: input, shape index: {}]
  %s5 = inlined_call_operand.hbm [shape: f32[8,128], index: 5, kind: output, shape index: {0}]
  %s6 = inlined_call_operand.hbm [shape: f32[8,128], index: 6, kind: output, shape index: {1}]
  %s7 = inlined_call_operand.hbm [shape: f32[8,128], index: 7, kind: output, shape index: {2}]
  %8 = xla_tuple %s5, %s6, %s7
  %s9 = sld [smem:[#allocation0]]
  $region62: #{tpu_custom_call.1} parent=0
    _
  %s11 = ssub.s32 1, %s9
  %s12 = scalar_select 0, %s11, %s9
  $region1: #{tpu_custom_call.1} parent=0
    #allocation2 [shape = 'u8[32768]{0}', space=vmem, size = 0x8000, scoped, tag = 'input window, operand 0, single buffered']
    #allocation3 [shape = 's32[1]{0}', space=sflag, size = 0x4, scoped, tag = 'scoped memory for tpu_custom_call.1']
    #allocation4 [shape = 's32[1]{0}', space=sflag, size = 0x4, scoped, tag = 'scoped memory for tpu_custom_call.1']
    #allocation5 [shape = 'u8[524288]{0}', space=vmem, size = 0x80000, scoped, tag = 'input window, operand 1, single buffered']
    #allocation6 [shape = 's32[1]{0}', space=sflag, size = 0x4, scoped, tag = 'scoped memory for tpu_custom_call.1']
    #allocation7 [shape = 'u8[65536]{0}', space=vmem, size = 0x10000, scoped, tag = 'input window, operand 2, single buffered']
    #allocation8 [shape = 'u8[131072]{0}', space=vmem, size = 0x20000, scoped, tag = 'input window, operand 3, single buffered']
    #allocation9 [shape = 's32[1]{0}', space=sflag, size = 0x4, scoped, tag = 'scoped memory for tpu_custom_call.1']
    #allocation10 [shape = 'u8[4096]{0}', space=vmem, size = 0x1000, scoped, tag = 'output window, operand 0, single buffered']
    #allocation11 [shape = 'u8[4096]{0}', space=vmem, size = 0x1000, scoped, tag = 'output window, operand 1, single buffered']
    #allocation12 [shape = 's32[1]{0}', space=sflag, size = 0x4, scoped, tag = 'scoped memory for tpu_custom_call.1']
    #allocation13 [shape = 'u8[4096]{0}', space=vmem, size = 0x1000, scoped, tag = 'output window, operand 2, single buffered']
    %13 = vsyncpa [#allocation3], 0
    %14 = vsyncpa [#allocation6], 0
    %15 = vsyncpa [#allocation9], 0
    %16 = vsyncpa [#allocation4], 0
    %17 = vsyncpa [#allocation12], 0
    // Predicated region
    $region2: #{tpu_custom_call.1} parent=1 // pred_check
      _
    $region3: #{tpu_custom_call.1} parent=1 // pred_check_branch
      %19 = sbr.rel (0) target = $region5
    $region4: #{tpu_custom_call.1} parent=1 // pred_region
      %21 = vsyncadd [#allocation3], 0
      %s23 = sshll.u32 %s0, 4
      %s24 = int_to_ptr.hbm [resolvable:$true] %s23
      %s25 = sshll.u32 [#allocation2], 4
      %s26 = int_to_ptr.vmem [resolvable:$true] %s25
      %28 = dma.hbm_to_vmem [thread:$0]  %s24, 1024, %s26, [#allocation3]
    $region5: #{tpu_custom_call.1} parent=1 // pred_fallthru
      _
    // Predicated region
    $region6: #{tpu_custom_call.1} parent=1 // pred_check
      _
    $region7: #{tpu_custom_call.1} parent=1 // pred_check_branch
      %30 = sbr.rel (0) target = $region9
    $region8: #{tpu_custom_call.1} parent=1 // pred_region
      %32 = vsyncadd [#allocation6], 0
      %s33 = sshll.u32 %s1, 4
      %s34 = int_to_ptr.hbm [resolvable:$true] %s33
      %s35 = sshll.u32 [#allocation5], 4
      %s36 = int_to_ptr.vmem [resolvable:$true] %s35
      %41 = dma.hbm_to_vmem [thread:$0]  %s34, 16384, %s36, [#allocation6], 128, 128, 8
    $region9: #{tpu_custom_call.1} parent=1 // pred_fallthru
      _
    // Predicated region
    $region10: #{tpu_custom_call.1} parent=1 // pred_check
      _
    $region11: #{tpu_custom_call.1} parent=1 // pred_check_branch
      %43 = sbr.rel (0) target = $region13
    $region12: #{tpu_custom_call.1} parent=1 // pred_region
      %45 = vsyncadd [#allocation6], 0
      %s46 = sshll.u32 %s2, 4
      %s47 = int_to_ptr.hbm [resolvable:$true] %s46
      %s48 = sshll.u32 [#allocation7], 4
      %s49 = int_to_ptr.vmem [resolvable:$true] %s48
      %54 = dma.hbm_to_vmem [thread:$0]  %s47, 2048, %s49, [#allocation6], 128, 128, 8
    $region13: #{tpu_custom_call.1} parent=1 // pred_fallthru
      _
    // Predicated region
    $region14: #{tpu_custom_call.1} parent=1 // pred_check
      _
    $region15: #{tpu_custom_call.1} parent=1 // pred_check_branch
      %56 = sbr.rel (0) target = $region17
    $region16: #{tpu_custom_call.1} parent=1 // pred_region
      %58 = vsyncadd [#allocation9], 0
      %s59 = sshll.u32 %s3, 4
      %s60 = int_to_ptr.hbm [resolvable:$true] %s59
      %s61 = sshll.u32 [#allocation8], 4
      %s62 = int_to_ptr.vmem [resolvable:$true] %s61
      %67 = dma.hbm_to_vmem [thread:$0]  %s60, 4096, %s62, [#allocation9], 128, 128, 8
    $region17: #{tpu_custom_call.1} parent=1 // pred_fallthru
      _
    // Predicated region
    $region18: #{tpu_custom_call.1} parent=1 // pred_check
      _
    $region19: #{tpu_custom_call.1} parent=1 // pred_check_branch
      %69 = sbr.rel (0) target = $region21
    $region20: #{tpu_custom_call.1} parent=1 // pred_region
      _
    $region21: #{tpu_custom_call.1} parent=1 // pred_fallthru
      _
    // Predicated region
    $region22: #{tpu_custom_call.1} parent=1 // pred_check
      _
    $region23: #{tpu_custom_call.1} parent=1 // pred_check_branch
      %71 = sbr.rel (0) target = $region25
    $region24: #{tpu_custom_call.1} parent=1 // pred_region
      %73 = dma.done [#allocation3], 1024
    $region25: #{tpu_custom_call.1} parent=1 // pred_fallthru
      _
    // Predicated region
    $region26: #{tpu_custom_call.1} parent=1 // pred_check
      _
    $region27: #{tpu_custom_call.1} parent=1 // pred_check_branch
      %75 = sbr.rel (0) target = $region29
    $region28: #{tpu_custom_call.1} parent=1 // pred_region
      %77 = dma.done [#allocation6], 16384
    $region29: #{tpu_custom_call.1} parent=1 // pred_fallthru
      _
    // Predicated region
    $region30: #{tpu_custom_call.1} parent=1 // pred_check
      _
    $region31: #{tpu_custom_call.1} parent=1 // pred_check_branch
      %79 = sbr.rel (0) target = $region33
    $region32: #{tpu_custom_call.1} parent=1 // pred_region
      %81 = dma.done [#allocation6], 2048
    $region33: #{tpu_custom_call.1} parent=1 // pred_fallthru
      _
    // Predicated region
    $region34: #{tpu_custom_call.1} parent=1 // pred_check
      _
    $region35: #{tpu_custom_call.1} parent=1 // pred_check_branch
      %83 = sbr.rel (0) target = $region37
    $region36: #{tpu_custom_call.1} parent=1 // pred_region
      %85 = dma.done [#allocation9], 4096
    $region37: #{tpu_custom_call.1} parent=1 // pred_fallthru
      _
    %v86 = vld [vmem:[#allocation2] sm:$0xff]
    %v87 = vld [vmem:[#allocation2 + $0x8] sm:$0xff]
    %v88 = vld [vmem:[#allocation2 + $0x10] sm:$0xff]
    %v89 = vld [vmem:[#allocation2 + $0x18] sm:$0xff]
    %v90 = vld [vmem:[#allocation2 + $0x20] sm:$0xff]
    %v91 = vld [vmem:[#allocation2 + $0x28] sm:$0xff]
    %v92 = vld [vmem:[#allocation2 + $0x30] sm:$0xff]
    %v93 = vld [vmem:[#allocation2 + $0x38] sm:$0xff]
    %v94 = vld [vmem:[#allocation5] sm:$0xff]
    %v95 = vld [vmem:[#allocation5 + $0x8] sm:$0xff]
    %v96 = vld [vmem:[#allocation5 + $0x10] sm:$0xff]
    %v97 = vld [vmem:[#allocation5 + $0x18] sm:$0xff]
    %v98 = vld [vmem:[#allocation5 + $0x20] sm:$0xff]
    %v99 = vld [vmem:[#allocation5 + $0x28] sm:$0xff]
    %v100 = vld [vmem:[#allocation5 + $0x30] sm:$0xff]
    %v101 = vld [vmem:[#allocation5 + $0x38] sm:$0xff]
    %v102 = vld [vmem:[#allocation5 + $0x40] sm:$0xff]
    %v103 = vld [vmem:[#allocation5 + $0x48] sm:$0xff]
    %v104 = vld [vmem:[#allocation5 + $0x50] sm:$0xff]
    %v105 = vld [vmem:[#allocation5 + $0x58] sm:$0xff]
    %v106 = vld [vmem:[#allocation5 + $0x60] sm:$0xff]
    %v107 = vld [vmem:[#allocation5 + $0x68] sm:$0xff]
    %v108 = vld [vmem:[#allocation5 + $0x70] sm:$0xff]
    %v109 = vld [vmem:[#allocation5 + $0x78] sm:$0xff]
    %v110 = vld [vmem:[#allocation5 + $0x80] sm:$0xff]
    %v111 = vld [vmem:[#allocation5 + $0x88] sm:$0xff]
    %v112 = vld [vmem:[#allocation5 + $0x90] sm:$0xff]
    %v113 = vld [vmem:[#allocation5 + $0x98] sm:$0xff]
    %v114 = vld [vmem:[#allocation5 + $0xa0] sm:$0xff]
    %v115 = vld [vmem:[#allocation5 + $0xa8] sm:$0xff]
    %v116 = vld [vmem:[#allocation5 + $0xb0] sm:$0xff]
    %v117 = vld [vmem:[#allocation5 + $0xb8] sm:$0xff]
    %v118 = vld [vmem:[#allocation5 + $0xc0] sm:$0xff]
    %v119 = vld [vmem:[#allocation5 + $0xc8] sm:$0xff]
    %v120 = vld [vmem:[#allocation5 + $0xd0] sm:$0xff]
    %v121 = vld [vmem:[#allocation5 + $0xd8] sm:$0xff]
    %v122 = vld [vmem:[#allocation5 + $0xe0] sm:$0xff]
    %v123 = vld [vmem:[#allocation5 + $0xe8] sm:$0xff]
    %v124 = vld [vmem:[#allocation5 + $0xf0] sm:$0xff]
    %v125 = vld [vmem:[#allocation5 + $0xf8] sm:$0xff]
    %v126 = vld [vmem:[#allocation5 + $0x100] sm:$0xff]
    %v127 = vld [vmem:[#allocation5 + $0x108] sm:$0xff]
    %v128 = vld [vmem:[#allocation5 + $0x110] sm:$0xff]
    %v129 = vld [vmem:[#allocation5 + $0x118] sm:$0xff]
    %v130 = vld [vmem:[#allocation5 + $0x120] sm:$0xff]
    %v131 = vld [vmem:[#allocation5 + $0x128] sm:$0xff]
    %v132 = vld [vmem:[#allocation5 + $0x130] sm:$0xff]
    %v133 = vld [vmem:[#allocation5 + $0x138] sm:$0xff]
    %v134 = vld [vmem:[#allocation5 + $0x140] sm:$0xff]
    %v135 = vld [vmem:[#allocation5 + $0x148] sm:$0xff]
    %v136 = vld [vmem:[#allocation5 + $0x150] sm:$0xff]
    %v137 = vld [vmem:[#allocation5 + $0x158] sm:$0xff]
    %v138 = vld [vmem:[#allocation5 + $0x160] sm:$0xff]
    %v139 = vld [vmem:[#allocation5 + $0x168] sm:$0xff]
    %v140 = vld [vmem:[#allocation5 + $0x170] sm:$0xff]
    %v141 = vld [vmem:[#allocation5 + $0x178] sm:$0xff]
    %v142 = vld [vmem:[#allocation5 + $0x180] sm:$0xff]
    %v143 = vld [vmem:[#allocation5 + $0x188] sm:$0xff]
    %v144 = vld [vmem:[#allocation5 + $0x190] sm:$0xff]
    %v145 = vld [vmem:[#allocation5 + $0x198] sm:$0xff]
    %v146 = vld [vmem:[#allocation5 + $0x1a0] sm:$0xff]
    %v147 = vld [vmem:[#allocation5 + $0x1a8] sm:$0xff]
    %v148 = vld [vmem:[#allocation5 + $0x1b0] sm:$0xff]
    %v149 = vld [vmem:[#allocation5 + $0x1b8] sm:$0xff]
    %v150 = vld [vmem:[#allocation5 + $0x1c0] sm:$0xff]
    %v151 = vld [vmem:[#allocation5 + $0x1c8] sm:$0xff]
    %v152 = vld [vmem:[#allocation5 + $0x1d0] sm:$0xff]
    %v153 = vld [vmem:[#allocation5 + $0x1d8] sm:$0xff]
    %v154 = vld [vmem:[#allocation5 + $0x1e0] sm:$0xff]
    %v155 = vld [vmem:[#allocation5 + $0x1e8] sm:$0xff]
    %v156 = vld [vmem:[#allocation5 + $0x1f0] sm:$0xff]
    %v157 = vld [vmem:[#allocation5 + $0x1f8] sm:$0xff]
    %v158 = vld [vmem:[#allocation5 + $0x200] sm:$0xff]
    %v159 = vld [vmem:[#allocation5 + $0x208] sm:$0xff]
    %v160 = vld [vmem:[#allocation5 + $0x210] sm:$0xff]
    %v161 = vld [vmem:[#allocation5 + $0x218] sm:$0xff]
    %v162 = vld [vmem:[#allocation5 + $0x220] sm:$0xff]
    %v163 = vld [vmem:[#allocation5 + $0x228] sm:$0xff]
    %v164 = vld [vmem:[#allocation5 + $0x230] sm:$0xff]
    %v165 = vld [vmem:[#allocation5 + $0x238] sm:$0xff]
    %v166 = vld [vmem:[#allocation5 + $0x240] sm:$0xff]
    %v167 = vld [vmem:[#allocation5 + $0x248] sm:$0xff]
    %v168 = vld [vmem:[#allocation5 + $0x250] sm:$0xff]
    %v169 = vld [vmem:[#allocation5 + $0x258] sm:$0xff]
    %v170 = vld [vmem:[#allocation5 + $0x260] sm:$0xff]
    %v171 = vld [vmem:[#allocation5 + $0x268] sm:$0xff]
    %v172 = vld [vmem:[#allocation5 + $0x270] sm:$0xff]
    %v173 = vld [vmem:[#allocation5 + $0x278] sm:$0xff]
    %v174 = vld [vmem:[#allocation5 + $0x280] sm:$0xff]
    %v175 = vld [vmem:[#allocation5 + $0x288] sm:$0xff]
    %v176 = vld [vmem:[#allocation5 + $0x290] sm:$0xff]
    %v177 = vld [vmem:[#allocation5 + $0x298] sm:$0xff]
    %v178 = vld [vmem:[#allocation5 + $0x2a0] sm:$0xff]
    %v179 = vld [vmem:[#allocation5 + $0x2a8] sm:$0xff]
    %v180 = vld [vmem:[#allocation5 + $0x2b0] sm:$0xff]
    %v181 = vld [vmem:[#allocation5 + $0x2b8] sm:$0xff]
    %v182 = vld [vmem:[#allocation5 + $0x2c0] sm:$0xff]
    %v183 = vld [vmem:[#allocation5 + $0x2c8] sm:$0xff]
    %v184 = vld [vmem:[#allocation5 + $0x2d0] sm:$0xff]
    %v185 = vld [vmem:[#allocation5 + $0x2d8] sm:$0xff]
    %v186 = vld [vmem:[#allocation5 + $0x2e0] sm:$0xff]
    %v187 = vld [vmem:[#allocation5 + $0x2e8] sm:$0xff]
    %v188 = vld [vmem:[#allocation5 + $0x2f0] sm:$0xff]
    %v189 = vld [vmem:[#allocation5 + $0x2f8] sm:$0xff]
    %v190 = vld [vmem:[#allocation5 + $0x300] sm:$0xff]
    %v191 = vld [vmem:[#allocation5 + $0x308] sm:$0xff]
    %v192 = vld [vmem:[#allocation5 + $0x310] sm:$0xff]
    %v193 = vld [vmem:[#allocation5 + $0x318] sm:$0xff]
    %v194 = vld [vmem:[#allocation5 + $0x320] sm:$0xff]
    %v195 = vld [vmem:[#allocation5 + $0x328] sm:$0xff]
    %v196 = vld [vmem:[#allocation5 + $0x330] sm:$0xff]
    %v197 = vld [vmem:[#allocation5 + $0x338] sm:$0xff]
    %v198 = vld [vmem:[#allocation5 + $0x340] sm:$0xff]
    %v199 = vld [vmem:[#allocation5 + $0x348] sm:$0xff]
    %v200 = vld [vmem:[#allocation5 + $0x350] sm:$0xff]
    %v201 = vld [vmem:[#allocation5 + $0x358] sm:$0xff]
    %v202 = vld [vmem:[#allocation5 + $0x360] sm:$0xff]
    %v203 = vld [vmem:[#allocation5 + $0x368] sm:$0xff]
    %v204 = vld [vmem:[#allocation5 + $0x370] sm:$0xff]
    %v205 = vld [vmem:[#allocation5 + $0x378] sm:$0xff]
    %v206 = vld [vmem:[#allocation5 + $0x380] sm:$0xff]
    %v207 = vld [vmem:[#allocation5 + $0x388] sm:$0xff]
    %v208 = vld [vmem:[#allocation5 + $0x390] sm:$0xff]
    %v209 = vld [vmem:[#allocation5 + $0x398] sm:$0xff]
    %v210 = vld [vmem:[#allocation5 + $0x3a0] sm:$0xff]
    %v211 = vld [vmem:[#allocation5 + $0x3a8] sm:$0xff]
    %v212 = vld [vmem:[#allocation5 + $0x3b0] sm:$0xff]
    %v213 = vld [vmem:[#allocation5 + $0x3b8] sm:$0xff]
    %v214 = vld [vmem:[#allocation5 + $0x3c0] sm:$0xff]
    %v215 = vld [vmem:[#allocation5 + $0x3c8] sm:$0xff]
    %v216 = vld [vmem:[#allocation5 + $0x3d0] sm:$0xff]
    %v217 = vld [vmem:[#allocation5 + $0x3d8] sm:$0xff]
    %v218 = vld [vmem:[#allocation5 + $0x3e0] sm:$0xff]
    %v219 = vld [vmem:[#allocation5 + $0x3e8] sm:$0xff]
    %v220 = vld [vmem:[#allocation5 + $0x3f0] sm:$0xff]
    %v221 = vld [vmem:[#allocation5 + $0x3f8] sm:$0xff]
    %222 = vmatpush.msra.mxu0 %v109
    %223 = vmatpush.msra.mxu0 %v108
    %224 = vmatpush.msra.mxu0 %v107
    %225 = vmatpush.msra.mxu0 %v106
    %226 = vmatpush.msra.mxu0 %v105
    %227 = vmatpush.msra.mxu0 %v104
    %228 = vmatpush.msra.mxu0 %v103
    %229 = vmatpush.msra.mxu0 %v102
    %230 = vmatpush.msra.mxu0 %v101
    %231 = vmatpush.msra.mxu0 %v100
    %232 = vmatpush.msra.mxu0 %v99
    %233 = vmatpush.msra.mxu0 %v98
    %234 = vmatpush.msra.mxu0 %v97
    %235 = vmatpush.msra.mxu0 %v96
    %236 = vmatpush.msra.mxu0 %v95
    %237 = vmatpush.msra.mxu0 %v94
    %238 = vmatmul.f32.gmra.mxu0 %v86
    %v239 = vpop.f32.mrf.mxu0
    %v240 = vadd.f32 0.0, %v239
    %241 = vdwg.mxu0
    %242 = vmatpush.msra.mxu0 %v125
    %243 = vmatpush.msra.mxu0 %v124
    %244 = vmatpush.msra.mxu0 %v123
    %245 = vmatpush.msra.mxu0 %v122
    %246 = vmatpush.msra.mxu0 %v121
    %247 = vmatpush.msra.mxu0 %v120
    %248 = vmatpush.msra.mxu0 %v119
    %249 = vmatpush.msra.mxu0 %v118
    %250 = vmatpush.msra.mxu0 %v117
    %251 = vmatpush.msra.mxu0 %v116
    %252 = vmatpush.msra.mxu0 %v115
    %253 = vmatpush.msra.mxu0 %v114
    %254 = vmatpush.msra.mxu0 %v113
    %255 = vmatpush.msra.mxu0 %v112
    %256 = vmatpush.msra.mxu0 %v111
    %257 = vmatpush.msra.mxu0 %v110
    %258 = vmatmul.f32.gmra.mxu0 %v87
    %v259 = vpop.f32.mrf.mxu0
    %v260 = vadd.f32 %v240, %v259
    %261 = vdwg.mxu0
    %262 = vmatpush.msra.mxu0 %v141
    %263 = vmatpush.msra.mxu0 %v140
    %264 = vmatpush.msra.mxu0 %v139
    %265 = vmatpush.msra.mxu0 %v138
    %266 = vmatpush.msra.mxu0 %v137
    %267 = vmatpush.msra.mxu0 %v136
    %268 = vmatpush.msra.mxu0 %v135
    %269 = vmatpush.msra.mxu0 %v134
    %270 = vmatpush.msra.mxu0 %v133
    %271 = vmatpush.msra.mxu0 %v132
    %272 = vmatpush.msra.mxu0 %v131
    %273 = vmatpush.msra.mxu0 %v130
    %274 = vmatpush.msra.mxu0 %v129
    %275 = vmatpush.msra.mxu0 %v128
    %276 = vmatpush.msra.mxu0 %v127
    %277 = vmatpush.msra.mxu0 %v126
    %278 = vmatmul.f32.gmra.mxu0 %v88
    %v279 = vpop.f32.mrf.mxu0
    %v280 = vadd.f32 %v260, %v279
    %281 = vdwg.mxu0
    %282 = vmatpush.msra.mxu0 %v157
    %283 = vmatpush.msra.mxu0 %v156
    %284 = vmatpush.msra.mxu0 %v155
    %285 = vmatpush.msra.mxu0 %v154
    %286 = vmatpush.msra.mxu0 %v153
    %287 = vmatpush.msra.mxu0 %v152
    %288 = vmatpush.msra.mxu0 %v151
    %289 = vmatpush.msra.mxu0 %v150
    %290 = vmatpush.msra.mxu0 %v149
    %291 = vmatpush.msra.mxu0 %v148
    %292 = vmatpush.msra.mxu0 %v147
    %293 = vmatpush.msra.mxu0 %v146
    %294 = vmatpush.msra.mxu0 %v145
    %295 = vmatpush.msra.mxu0 %v144
    %296 = vmatpush.msra.mxu0 %v143
    %297 = vmatpush.msra.mxu0 %v142
    %298 = vmatmul.f32.gmra.mxu0 %v89
    %v299 = vpop.f32.mrf.mxu0
    %v300 = vadd.f32 %v280, %v299
    %301 = vdwg.mxu0
    %302 = vmatpush.msra.mxu0 %v173
    %303 = vmatpush.msra.mxu0 %v172
    %304 = vmatpush.msra.mxu0 %v171
    %305 = vmatpush.msra.mxu0 %v170
    %306 = vmatpush.msra.mxu0 %v169
    %307 = vmatpush.msra.mxu0 %v168
    %308 = vmatpush.msra.mxu0 %v167
    %309 = vmatpush.msra.mxu0 %v166
    %310 = vmatpush.msra.mxu0 %v165
    %311 = vmatpush.msra.mxu0 %v164
    %312 = vmatpush.msra.mxu0 %v163
    %313 = vmatpush.msra.mxu0 %v162
    %314 = vmatpush.msra.mxu0 %v161
    %315 = vmatpush.msra.mxu0 %v160
    %316 = vmatpush.msra.mxu0 %v159
    %317 = vmatpush.msra.mxu0 %v158
    %318 = vmatmul.f32.gmra.mxu0 %v90
    %v319 = vpop.f32.mrf.mxu0
    %v320 = vadd.f32 %v300, %v319
    %321 = vdwg.mxu0
    %322 = vmatpush.msra.mxu0 %v189
    %323 = vmatpush.msra.mxu0 %v188
    %324 = vmatpush.msra.mxu0 %v187
    %325 = vmatpush.msra.mxu0 %v186
    %326 = vmatpush.msra.mxu0 %v185
    %327 = vmatpush.msra.mxu0 %v184
    %328 = vmatpush.msra.mxu0 %v183
    %329 = vmatpush.msra.mxu0 %v182
    %330 = vmatpush.msra.mxu0 %v181
    %331 = vmatpush.msra.mxu0 %v180
    %332 = vmatpush.msra.mxu0 %v179
    %333 = vmatpush.msra.mxu0 %v178
    %334 = vmatpush.msra.mxu0 %v177
    %335 = vmatpush.msra.mxu0 %v176
    %336 = vmatpush.msra.mxu0 %v175
    %337 = vmatpush.msra.mxu0 %v174
    %338 = vmatmul.f32.gmra.mxu0 %v91
    %v339 = vpop.f32.mrf.mxu0
    %v340 = vadd.f32 %v320, %v339
    %341 = vdwg.mxu0
    %342 = vmatpush.msra.mxu0 %v205
    %343 = vmatpush.msra.mxu0 %v204
    %344 = vmatpush.msra.mxu0 %v203
    %345 = vmatpush.msra.mxu0 %v202
    %346 = vmatpush.msra.mxu0 %v201
    %347 = vmatpush.msra.mxu0 %v200
    %348 = vmatpush.msra.mxu0 %v199
    %349 = vmatpush.msra.mxu0 %v198
    %350 = vmatpush.msra.mxu0 %v197
    %351 = vmatpush.msra.mxu0 %v196
    %352 = vmatpush.msra.mxu0 %v195
    %353 = vmatpush.msra.mxu0 %v194
    %354 = vmatpush.msra.mxu0 %v193
    %355 = vmatpush.msra.mxu0 %v192
    %356 = vmatpush.msra.mxu0 %v191
    %357 = vmatpush.msra.mxu0 %v190
    %358 = vmatmul.f32.gmra.mxu0 %v92
    %v359 = vpop.f32.mrf.mxu0
    %v360 = vadd.f32 %v340, %v359
    %361 = vdwg.mxu0
    %362 = vmatpush.msra.mxu0 %v221
    %363 = vmatpush.msra.mxu0 %v220
    %364 = vmatpush.msra.mxu0 %v219
    %365 = vmatpush.msra.mxu0 %v218
    %366 = vmatpush.msra.mxu0 %v217
    %367 = vmatpush.msra.mxu0 %v216
    %368 = vmatpush.msra.mxu0 %v215
    %369 = vmatpush.msra.mxu0 %v214
    %370 = vmatpush.msra.mxu0 %v213
    %371 = vmatpush.msra.mxu0 %v212
    %372 = vmatpush.msra.mxu0 %v211
    %373 = vmatpush.msra.mxu0 %v210
    %374 = vmatpush.msra.mxu0 %v209
    %375 = vmatpush.msra.mxu0 %v208
    %376 = vmatpush.msra.mxu0 %v207
    %377 = vmatpush.msra.mxu0 %v206
    %378 = vmatmul.f32.gmra.mxu0 %v93
    %v379 = vpop.f32.mrf.mxu0
    %v380 = vadd.f32 %v360, %v379
    %381 = vdwg.mxu0
    %382 = vst [vmem:[#allocation13] sm:$0xff] %v380
    %v383 = vld [vmem:[#allocation7] sm:$0xff]
    %v384 = vld [vmem:[#allocation7 + $0x8] sm:$0xff]
    %v385 = vld [vmem:[#allocation7 + $0x10] sm:$0xff]
    %v386 = vld [vmem:[#allocation7 + $0x18] sm:$0xff]
    %v387 = vld [vmem:[#allocation7 + $0x20] sm:$0xff]
    %v388 = vld [vmem:[#allocation7 + $0x28] sm:$0xff]
    %v389 = vld [vmem:[#allocation7 + $0x30] sm:$0xff]
    %v390 = vld [vmem:[#allocation7 + $0x38] sm:$0xff]
    %v391 = vld [vmem:[#allocation7 + $0x40] sm:$0xff]
    %v392 = vld [vmem:[#allocation7 + $0x48] sm:$0xff]
    %v393 = vld [vmem:[#allocation7 + $0x50] sm:$0xff]
    %v394 = vld [vmem:[#allocation7 + $0x58] sm:$0xff]
    %v395 = vld [vmem:[#allocation7 + $0x60] sm:$0xff]
    %v396 = vld [vmem:[#allocation7 + $0x68] sm:$0xff]
    %v397 = vld [vmem:[#allocation7 + $0x70] sm:$0xff]
    %v398 = vld [vmem:[#allocation7 + $0x78] sm:$0xff]
    %399 = vmatpush.msra.mxu0 %v398
    %400 = vmatpush.msra.mxu0 %v397
    %401 = vmatpush.msra.mxu0 %v396
    %402 = vmatpush.msra.mxu0 %v395
    %403 = vmatpush.msra.mxu0 %v394
    %404 = vmatpush.msra.mxu0 %v393
    %405 = vmatpush.msra.mxu0 %v392
    %406 = vmatpush.msra.mxu0 %v391
    %407 = vmatpush.msra.mxu0 %v390
    %408 = vmatpush.msra.mxu0 %v389
    %409 = vmatpush.msra.mxu0 %v388
    %410 = vmatpush.msra.mxu0 %v387
    %411 = vmatpush.msra.mxu0 %v386
    %412 = vmatpush.msra.mxu0 %v385
    %413 = vmatpush.msra.mxu0 %v384
    %414 = vmatpush.msra.mxu0 %v383
    %415 = vmatmul.f32.gmra.mxu0 %v380
    %v416 = vpop.f32.mrf.mxu0
    %v417 = vadd.f32 0.0, %v416
    %418 = vdwg.mxu0
    %419 = vst [vmem:[#allocation11] sm:$0xff] %v417
    %v420 = vmul.f32 %v417, %v417
    %v421 = vld [vmem:[#allocation8] sm:$0xff]
    %v422 = vld [vmem:[#allocation8 + $0x8] sm:$0xff]
    %v423 = vld [vmem:[#allocation8 + $0x10] sm:$0xff]
    %v424 = vld [vmem:[#allocation8 + $0x18] sm:$0xff]
    %v425 = vld [vmem:[#allocation8 + $0x20] sm:$0xff]
    %v426 = vld [vmem:[#allocation8 + $0x28] sm:$0xff]
    %v427 = vld [vmem:[#allocation8 + $0x30] sm:$0xff]
    %v428 = vld [vmem:[#allocation8 + $0x38] sm:$0xff]
    %v429 = vld [vmem:[#allocation8 + $0x40] sm:$0xff]
    %v430 = vld [vmem:[#allocation8 + $0x48] sm:$0xff]
    %v431 = vld [vmem:[#allocation8 + $0x50] sm:$0xff]
    %v432 = vld [vmem:[#allocation8 + $0x58] sm:$0xff]
    %v433 = vld [vmem:[#allocation8 + $0x60] sm:$0xff]
    %v434 = vld [vmem:[#allocation8 + $0x68] sm:$0xff]
    %v435 = vld [vmem:[#allocation8 + $0x70] sm:$0xff]
    %v436 = vld [vmem:[#allocation8 + $0x78] sm:$0xff]
    %v437 = vld [vmem:[#allocation8 + $0x80] sm:$0xff]
    %v438 = vld [vmem:[#allocation8 + $0x88] sm:$0xff]
    %v439 = vld [vmem:[#allocation8 + $0x90] sm:$0xff]
    %v440 = vld [vmem:[#allocation8 + $0x98] sm:$0xff]
    %v441 = vld [vmem:[#allocation8 + $0xa0] sm:$0xff]
    %v442 = vld [vmem:[#allocation8 + $0xa8] sm:$0xff]
    %v443 = vld [vmem:[#allocation8 + $0xb0] sm:$0xff]
    %v444 = vld [vmem:[#allocation8 + $0xb8] sm:$0xff]
    %v445 = vld [vmem:[#allocation8 + $0xc0] sm:$0xff]
    %v446 = vld [vmem:[#allocation8 + $0xc8] sm:$0xff]
    %v447 = vld [vmem:[#allocation8 + $0xd0] sm:$0xff]
    %v448 = vld [vmem:[#allocation8 + $0xd8] sm:$0xff]
    %v449 = vld [vmem:[#allocation8 + $0xe0] sm:$0xff]
    %v450 = vld [vmem:[#allocation8 + $0xe8] sm:$0xff]
    %v451 = vld [vmem:[#allocation8 + $0xf0] sm:$0xff]
    %v452 = vld [vmem:[#allocation8 + $0xf8] sm:$0xff]
    %v453 = vld [vmem:[%s4] sm:$0x1]
    %v455 = vperm.slane %v453, 0
    %457 = vmatpush.msra.mxu0 %v436
    %458 = vmatpush.msra.mxu0 %v435
    %459 = vmatpush.msra.mxu0 %v434
    %460 = vmatpush.msra.mxu0 %v433
    %461 = vmatpush.msra.mxu0 %v432
    %462 = vmatpush.msra.mxu0 %v431
    %463 = vmatpush.msra.mxu0 %v430
    %464 = vmatpush.msra.mxu0 %v429
    %465 = vmatpush.msra.mxu0 %v428
    %466 = vmatpush.msra.mxu0 %v427
    %467 = vmatpush.msra.mxu0 %v426
    %468 = vmatpush.msra.mxu0 %v425
    %469 = vmatpush.msra.mxu0 %v424
    %470 = vmatpush.msra.mxu0 %v423
    %471 = vmatpush.msra.mxu0 %v422
    %472 = vmatpush.msra.mxu0 %v421
    %473 = vmatmul.f32.gmra.mxu0 %v420
    %v474 = vpop.f32.mrf.mxu0
    %v475 = vadd.f32 %v455, %v474
    %476 = vdwg.mxu0
    %477 = vmatpush.msra.mxu0 %v452
    %478 = vmatpush.msra.mxu0 %v451
    %479 = vmatpush.msra.mxu0 %v450
    %480 = vmatpush.msra.mxu0 %v449
    %481 = vmatpush.msra.mxu0 %v448
    %482 = vmatpush.msra.mxu0 %v447
    %483 = vmatpush.msra.mxu0 %v446
    %484 = vmatpush.msra.mxu0 %v445
    %485 = vmatpush.msra.mxu0 %v444
    %486 = vmatpush.msra.mxu0 %v443
    %487 = vmatpush.msra.mxu0 %v442
    %488 = vmatpush.msra.mxu0 %v441
    %489 = vmatpush.msra.mxu0 %v440
    %490 = vmatpush.msra.mxu0 %v439
    %491 = vmatpush.msra.mxu0 %v438
    %492 = vmatpush.msra.mxu0 %v437
    %493 = vmatmul.f32.gmra.mxu0 %v417
    %v494 = vpop.f32.mrf.mxu0
    %v495 = vadd.f32 %v475, %v494
    %496 = vdwg.mxu0
    %v497 = vmul.f32 %v495, 1.442695
    %v498 = vpow.pop %v497
    %499 = vst [vmem:[#allocation10] sm:$0xff] %v498
    // Predicated region
    $region38: #{tpu_custom_call.1} parent=1 // pred_check
      _
    $region39: #{tpu_custom_call.1} parent=1 // pred_check_branch
      %501 = sbr.rel (0) target = $region41
    $region40: #{tpu_custom_call.1} parent=1 // pred_region
      %503 = vsyncadd [#allocation4], 0
      %s505 = sshll.u32 [#allocation10], 4
      %s506 = int_to_ptr.vmem [resolvable:$true] %s505
      %s507 = sshll.u32 %s5, 4
      %s508 = int_to_ptr.hbm [resolvable:$true] %s507
      %510 = dma.vmem_to_hbm [thread:$0]  %s506, 128, %s508, [#allocation4]
    $region41: #{tpu_custom_call.1} parent=1 // pred_fallthru
      _
    // Predicated region
    $region42: #{tpu_custom_call.1} parent=1 // pred_check
      _
    $region43: #{tpu_custom_call.1} parent=1 // pred_check_branch
      %512 = sbr.rel (0) target = $region45
    $region44: #{tpu_custom_call.1} parent=1 // pred_region
      %514 = vsyncadd [#allocation12], 0
      %s516 = sshll.u32 [#allocation11], 4
      %s517 = int_to_ptr.vmem [resolvable:$true] %s516
      %s518 = sshll.u32 %s6, 4
      %s519 = int_to_ptr.hbm [resolvable:$true] %s518
      %521 = dma.vmem_to_hbm [thread:$0]  %s517, 128, %s519, [#allocation12]
    $region45: #{tpu_custom_call.1} parent=1 // pred_fallthru
      _
    // Predicated region
    $region46: #{tpu_custom_call.1} parent=1 // pred_check
      _
    $region47: #{tpu_custom_call.1} parent=1 // pred_check_branch
      %523 = sbr.rel (0) target = $region49
    $region48: #{tpu_custom_call.1} parent=1 // pred_region
      %525 = vsyncadd [#allocation12], 0
      %s527 = sshll.u32 [#allocation13], 4
      %s528 = int_to_ptr.vmem [resolvable:$true] %s527
      %s529 = sshll.u32 %s7, 4
      %s530 = int_to_ptr.hbm [resolvable:$true] %s529
      %532 = dma.vmem_to_hbm [thread:$0]  %s528, 128, %s530, [#allocation12]
    $region49: #{tpu_custom_call.1} parent=1 // pred_fallthru
      _
    // Predicated region
    $region50: #{tpu_custom_call.1} parent=1 // pred_check
      _
    $region51: #{tpu_custom_call.1} parent=1 // pred_check_branch
      %534 = sbr.rel (0) target = $region53
    $region52: #{tpu_custom_call.1} parent=1 // pred_region
      %536 = dma.done [#allocation4], 128
    $region53: #{tpu_custom_call.1} parent=1 // pred_fallthru
      _
    // Predicated region
    $region54: #{tpu_custom_call.1} parent=1 // pred_check
      _
    $region55: #{tpu_custom_call.1} parent=1 // pred_check_branch
      %538 = sbr.rel (0) target = $region57
    $region56: #{tpu_custom_call.1} parent=1 // pred_region
      %540 = dma.done [#allocation12], 128
    $region57: #{tpu_custom_call.1} parent=1 // pred_fallthru
      _
    // Predicated region
    $region58: #{tpu_custom_call.1} parent=1 // pred_check
      _
    $region59: #{tpu_custom_call.1} parent=1 // pred_check_branch
      %542 = sbr.rel (0) target = $region61
    $region60: #{tpu_custom_call.1} parent=1 // pred_region
      %544 = dma.done [#allocation12], 128
    $region61: #{tpu_custom_call.1} parent=1 // pred_fallthru
      _
    %545 = vsyncpa [#allocation3], 1
    %546 = vsyncpa [#allocation6], 1
    %547 = vsyncpa [#allocation9], 1
    %548 = vsyncpa [#allocation4], 1
    %549 = vsyncpa [#allocation12], 1

</llo_original>
